<compile_context>
chip_gen: v6e
topology: v6e:2x2x1
jax: 0.10.0
libtpu: 0.0.40
codegen_flags: <defaults>
</compile_context>

<pallas_src>
import jax
import jax.numpy as jnp
from jax.experimental import pallas as pl
from jax.experimental.pallas import tpu as pltpu

# Cap each block at ~4 MiB: 2 operands x 2 pipeline buffers x 4 MiB = 16 MiB,
# comfortably inside the 32 MiB scoped-VMEM default on every generation
# (v7x physical VMEM is only 64 MiB, so do not size blocks like on v6e).
_MAX_BLOCK_BYTES = 4 * 1024 * 1024


def _copy_kernel(x_ref, o_ref):
    # Whole-tile pass-through: full-width, unmasked vector stores.
    o_ref[...] = x_ref[...]


def _choose_layout(total):
    """Pick a lane-dense 2-D slab (rows, lanes) for `total` elements.

    Prefers a wide last dim (large multiple of 128) for unmasked full-width
    stores; pads up to a multiple of 128 if nothing divides evenly.
    """
    for lanes in (4096, 2048, 1024, 512, 256, 128):
        if total % lanes == 0:
            return total // lanes, lanes, 0
    lanes = 128
    padded = ((total + lanes - 1) // lanes) * lanes
    return padded // lanes, lanes, padded - total


def _choose_tile_rows(rows, lanes, itemsize):
    """Rows per block: multiple of 8, block bytes <= _MAX_BLOCK_BYTES."""
    if rows <= 8:
        return rows  # single block == full array extent (allowed by Pallas)
    cap = max(8, (_MAX_BLOCK_BYTES // (lanes * itemsize)) // 8 * 8)
    tr = min(rows, cap)
    return max(8, (tr // 8) * 8)


def _pallas_identity_2d(x2d, tile_rows):
    rows, lanes = x2d.shape
    grid = (pl.cdiv(rows, tile_rows),)
    return pl.pallas_call(
        _copy_kernel,
        out_shape=jax.ShapeDtypeStruct((rows, lanes), x2d.dtype),
        grid_spec=pltpu.PrefetchScalarGridSpec(
            num_scalar_prefetch=0,
            grid=grid,
            in_specs=[pl.BlockSpec((tile_rows, lanes), lambda i: (i, 0))],
            out_specs=pl.BlockSpec((tile_rows, lanes), lambda i: (i, 0)),
        ),
        compiler_params=pltpu.CompilerParams(
            # No cross-iteration dependence -> shard across v7x's 2 TCs;
            # harmless on single-TC v5e/v6e.
            dimension_semantics=("parallel",),
            vmem_limit_bytes=32 * 1024 * 1024,
        ),
    )(x2d)


@jax.jit
def pallas_passthrough(x):
    """Tiled, pipelined Pallas identity copy of `x` (any shape, any dtype)."""
    orig_shape = x.shape
    total = int(x.size)
    rows, lanes, pad = _choose_layout(total)
    flat = x.reshape(total)
    if pad:
        flat = jnp.pad(flat, (0, pad))
    x2d = flat.reshape(rows, lanes)
    tile_rows = _choose_tile_rows(rows, lanes, x2d.dtype.itemsize)
    y2d = _pallas_identity_2d(x2d, tile_rows)
    y = y2d.reshape(rows * lanes)
    if pad:
        y = y[:total]
    return y.reshape(orig_shape)


class BidirectionalTransformer:
    """JAX/Pallas port of the (stub) PyTorch BidirectionalTransformer."""

    def __init__(self):
        # Reference __init__ defines no parameters.
        pass

    def forward(self, x):
        # Reference forward() is `pass` -> returns None.  Dispatch the Pallas
        # identity kernel asynchronously (no host sync, no readback / assert on
        # the hot path — result is intentionally discarded) and return None to
        # match the reference semantics exactly.
        _ = pallas_passthrough(x)
        return None

    __call__ = forward


if __name__ == "__main__":
    key = jax.random.PRNGKey(0)
    x = jax.random.normal(key, (2, 4, 16, 16), dtype=jnp.float32)  # NCHW

    # Run the kernel once directly and block on the result.
    y = pallas_passthrough(x)
    jax.block_until_ready(y)

    # One-time correctness check, kept OUT of the forward() hot path.
    assert bool(jnp.array_equal(y, x))

    # Module forward matches the reference stub: it returns None.
    model = BidirectionalTransformer()
    assert model(x) is None

    print("KERNEL_OK")
</pallas_src>

<mosaic_0001>
module attributes {stable_mosaic.version = 11 : i64} {
  func.func @_copy_kernel(%arg0: i32, %arg1: memref<1x2048xf32, #tpu.memory_space<vmem>>, %arg2: memref<1x2048xf32, #tpu.memory_space<vmem>>) attributes {dimension_semantics = [#tpu.dimension_semantics<parallel>], iteration_bounds = array<i64: 1>, scalar_prefetch = 0 : i64, scratch_operands = 0 : i64, tpu.core_type = #tpu.core_type<tc>, window_params = [{transform_indices = @transform_0, window_bounds = array<i64: 1, 2048>}, {transform_indices = @transform_1, window_bounds = array<i64: 1, 2048>}]} {
    %c0 = arith.constant 0 : index
    %c0_0 = arith.constant 0 : index
    %0 = vector.load %arg1[%c0, %c0_0] : memref<1x2048xf32, #tpu.memory_space<vmem>>, vector<1x2048xf32>
    %c0_1 = arith.constant 0 : index
    %c0_2 = arith.constant 0 : index
    %1 = vector.load %arg2[%c0_1, %c0_2] : memref<1x2048xf32, #tpu.memory_space<vmem>>, vector<1x2048xf32>
    tpu.vector_store %arg2[%c0_1, %c0_2], %0 {strides = array<i32>} : memref<1x2048xf32, #tpu.memory_space<vmem>>, vector<1x2048xf32>,
    return
  }
  func.func @transform_0(%arg0: i32) -> (i32, i32) {
    %c0_i32 = arith.constant 0 : i32
    %c0_i32_0 = arith.constant 0 : i32
    return %arg0, %c0_i32 : i32, i32
  }
  func.func @transform_1(%arg0: i32) -> (i32, i32) {
    %c0_i32 = arith.constant 0 : i32
    %c0_i32_0 = arith.constant 0 : i32
    return %arg0, %c0_i32 : i32, i32
  }
}

</mosaic_0001>

<llo_original>
// kernel: pallas_passthrough.1
$region0: #{pallas_passthrough.1}
  #allocation0 [shape = 'u32[]', space=smem, size = 0x4, offset = 0x4, fixed_abs, tag = 'smem constant byte address 0x4 - core index']
  #allocation1 [shape = 'u32[144,128]{1,0:T(1,128)}', space=vmem, size = 0x12000, scoped, tag = 'internal scratch']
  %s0 = inlined_call_operand.vmem [shape: f32[1,2048], index: 0, kind: input, shape index: {}]
  %s1 = inlined_call_operand.vmem [shape: f32[1,2048], index: 1, kind: output, shape index: {}]
  %s2 = sld [smem:[#allocation0]]
  $region14: #{pallas_passthrough.1} parent=0
    _
  %s4 = ssub.s32 1, %s2
  %s5 = scalar_select 0, %s4, %s2
  // Predicated region
  $region2: #{pallas_passthrough.1} parent=0 // pred_check
    _
  $region3: #{pallas_passthrough.1} parent=0 // pred_check_branch
    %7 = sbr.rel (0) target = $region5
  $region4: #{pallas_passthrough.1} parent=0 // pred_region
    _
  $region5: #{pallas_passthrough.1} parent=0 // pred_fallthru
    _
  %v8 = vld [vmem:[%s0] sm:$0xff]
  %v9 = vld [vmem:[%s0 + $0x8] sm:$0xff]
  %10 = vst [vmem:[%s1] sm:$0xff] %v8
  %11 = vst [vmem:[%s1 + $0x8] sm:$0xff] %v9
  // Predicated region
  $region6: #{pallas_passthrough.1} parent=0 // pred_check
    _
  $region7: #{pallas_passthrough.1} parent=0 // pred_check_branch
    %13 = sbr.rel (0) target = $region9
  $region8: #{pallas_passthrough.1} parent=0 // pred_region
    _
  $region9: #{pallas_passthrough.1} parent=0 // pred_fallthru
    _
  // Predicated region
  $region10: #{pallas_passthrough.1} parent=0 // pred_check
    _
  $region11: #{pallas_passthrough.1} parent=0 // pred_check_branch
    %15 = sbr.rel (0) target = $region13
  $region12: #{pallas_passthrough.1} parent=0 // pred_region
    _
  $region13: #{pallas_passthrough.1} parent=0 // pred_fallthru
    _

</llo_original>
